<compile_context>
chip_gen: v7x
topology: tpu7x:2x2x1
jax: 0.10.0
libtpu: 0.0.40
codegen_flags: <defaults>
</compile_context>

<pallas_src>
import functools

import jax
import jax.numpy as jnp
from jax import lax
from jax.experimental import pallas as pl
from jax.experimental.pallas import tpu as pltpu

_EPS = 1e-6
# Conservative count of plane-sized f32 temporaries live while one (H, W) plane
# is processed in the kernel body (x, two shifted copies, v, h, select buffer).
_TEMP_PLANES = 6


def _tpu_vmem_capacity_bytes():
    """Physical VMEM per TensorCore; falls back to the v7x 64 MiB minimum."""
    try:
        info = pltpu.get_tpu_info()
        cap = getattr(info, "vmem_capacity_bytes", None)
        if cap:
            return int(cap)
    except Exception:
        pass
    return 64 * 2 ** 20


def _vert_diff(x, use_roll):
    """x[i+1, j] - x[i-1, j] with zero padding outside the plane (x is f32)."""
    H, W = x.shape
    if H == 1:
        return jnp.zeros((H, W), jnp.float32)
    if use_roll:
        # Wrapped rolls on the XLU. Only v^2 is consumed downstream, so the
        # interior is insensitive to the roll direction convention; the two
        # border rows are overwritten with exact values via narrow selects.
        v = pltpu.roll(x, H - 1, axis=0) - pltpu.roll(x, 1, axis=0)
        row = lax.broadcasted_iota(jnp.int32, (H, 1), 0)
        v = jnp.where(row == 0, x[1:2, :], v)
        v = jnp.where(row == H - 1, -x[H - 2:H - 1, :], v)
        return v
    zrow = jnp.zeros((1, W), jnp.float32)
    up = jnp.concatenate([zrow, x[:-1, :]], axis=0)
    down = jnp.concatenate([x[1:, :], zrow], axis=0)
    return down - up


def _horiz_diff(x, use_roll):
    """x[i, j+1] - x[i, j-1] with zero padding outside the plane (x is f32)."""
    H, W = x.shape
    if W == 1:
        return jnp.zeros((H, W), jnp.float32)
    if use_roll:
        h = pltpu.roll(x, W - 1, axis=1) - pltpu.roll(x, 1, axis=1)
        col = lax.broadcasted_iota(jnp.int32, (1, W), 1)
        h = jnp.where(col == 0, x[:, 1:2], h)
        h = jnp.where(col == W - 1, -x[:, W - 2:W - 1], h)
        return h
    zcol = jnp.zeros((H, 1), jnp.float32)
    left = jnp.concatenate([zcol, x[:, :-1]], axis=1)
    right = jnp.concatenate([x[:, 1:], zcol], axis=1)
    return right - left


def _grad_block_kernel(x_ref, o_ref, *, use_roll):
    """Whole-plane path: block = (bn, 1, H, W); one channel plane per b."""
    bn = x_ref.shape[0]
    for b in range(bn):  # static; bn is sized so bn * per-plane temps fit VMEM
        x = x_ref[b, 0].astype(jnp.float32)
        v = _vert_diff(x, use_roll)
        h = _horiz_diff(x, use_roll)
        o_ref[b, 0] = jnp.sqrt(v * v + h * h + _EPS).astype(o_ref.dtype)


def _grad_strip_kernel(x_ref, top_ref, bot_ref, o_ref, *, n_strips, use_roll):
    """H-strip path: 1-row halos come from neighbouring 8-row halo blocks."""
    s = pl.program_id(2)
    th, W = x_ref.shape[2], x_ref.shape[3]
    f32 = jnp.float32

    mid = x_ref[0, 0].astype(f32)          # (th, W)
    h = _horiz_diff(mid, use_roll)         # W stays whole -> no halo needed
    v = _vert_diff(mid, use_roll)          # correct for the strip interior rows

    # Halo rows: last row of the 8-row block above the strip / first row of the
    # 8-row block below it; at the image borders the halo is the conv's zero pad.
    top = jnp.where(s == 0, 0.0, top_ref[0, 0, 7:8, :].astype(f32))             # (1, W)
    bot = jnp.where(s == n_strips - 1, 0.0, bot_ref[0, 0, 0:1, :].astype(f32))  # (1, W)
    row = lax.broadcasted_iota(jnp.int32, (th, 1), 0)
    v = jnp.where(row == 0, mid[1:2, :] - top, v)
    v = jnp.where(row == th - 1, bot - mid[th - 2:th - 1, :], v)

    o_ref[0, 0] = jnp.sqrt(v * v + h * h + _EPS).astype(o_ref.dtype)


def get_gradient_nopadding(x, *, vmem_budget_bytes=None, _force_path=None):
    """x: (N, C, H, W) with C >= 3. Returns (N, 3, H, W) gradient magnitude."""
    N, C, H, W = x.shape
    if C < 3:
        raise ValueError("Get_gradient_nopadding uses the first 3 channels; C >= 3 required")
    if _force_path not in (None, "block", "strip"):
        raise ValueError("_force_path must be None, 'block' or 'strip'")

    out_dtype = x.dtype if jnp.issubdtype(x.dtype, jnp.floating) else jnp.float32
    in_b = jnp.dtype(x.dtype).itemsize
    out_b = jnp.dtype(out_dtype).itemsize
    plane = H * W

    cap = _tpu_vmem_capacity_bytes()
    budget = int(vmem_budget_bytes) if vmem_budget_bytes else int(0.75 * cap)

    use_roll = (H % 8 == 0) and (W % 128 == 0)

    def ws_block(bn):
        # Double-buffered in/out blocks + in-kernel f32 temporaries (the static
        # batch unroll may keep up to bn planes' temporaries live at once).
        return 2 * bn * plane * (in_b + out_b) + _TEMP_PLANES * bn * plane * 4

    def ws_strip(th):
        # Strip + two 8-row halo blocks (double-buffered) + out + temporaries.
        return (2 * (th + 16) * W * in_b + 2 * th * W * out_b
                + _TEMP_PLANES * th * W * 4)

    strip_cands = [t for t in range(8, H, 8) if H % t == 0]

    path = _force_path
    if path is None:
        path = "block" if (ws_block(1) <= budget or not strip_cands) else "strip"
    if path == "strip" and not strip_cands:
        # TODO(synk): no multiple-of-8 strip height divides H; fall back to whole
        # planes even though they may exceed the VMEM budget for extreme sizes.
        path = "block"

    cost = pl.CostEstimate(
        flops=6 * N * 3 * plane,
        transcendentals=N * 3 * plane,  # the sqrt
        bytes_accessed=N * 3 * plane * (in_b + out_b),
    )

    if path == "block":
        bn = 1
        for cand in range(min(N, 512), 0, -1):
            if N % cand == 0 and ws_block(cand) <= budget:
                bn = cand
                break
        vmem_need = ws_block(bn)
        idx = lambda i, c: (i, c, 0, 0)
        kernel = functools.partial(_grad_block_kernel, use_roll=use_roll)
        grid = (N // bn, 3)
        in_specs = [pl.BlockSpec((bn, 1, H, W), idx)]
        out_specs = pl.BlockSpec((bn, 1, H, W), idx)
        dims = ("parallel", "parallel")
        args = (x,)
    else:
        fitting = [t for t in strip_cands if ws_strip(t) <= budget]
        th = max(fitting) if fitting else min(strip_cands)
        n_strips = H // th
        tb = th // 8
        hb = H // 8
        vmem_need = ws_strip(th)
        kernel = functools.partial(
            _grad_strip_kernel, n_strips=n_strips, use_roll=(W % 128 == 0))
        grid = (N, 3, n_strips)
        in_specs = [
            pl.BlockSpec((1, 1, th, W), lambda n, c, s: (n, c, s, 0)),
            # 8-row block directly above the strip (its last row is the top halo).
            pl.BlockSpec((1, 1, 8, W),
                         lambda n, c, s: (n, c, jnp.maximum(s * tb - 1, 0), 0)),
            # 8-row block directly below the strip (its first row is the bottom halo).
            pl.BlockSpec((1, 1, 8, W),
                         lambda n, c, s: (n, c, jnp.minimum((s + 1) * tb, hb - 1), 0)),
        ]
        out_specs = pl.BlockSpec((1, 1, th, W), lambda n, c, s: (n, c, s, 0))
        dims = ("parallel", "parallel", "arbitrary")
        args = (x, x, x)

    vmem_limit = int(min(max(vmem_need + (2 << 20), budget, 16 * 2 ** 20),
                         int(0.9 * cap)))

    call = pl.pallas_call(
        kernel,
        out_shape=jax.ShapeDtypeStruct((N, 3, H, W), out_dtype),
        grid_spec=pltpu.PrefetchScalarGridSpec(
            num_scalar_prefetch=0,
            grid=grid,
            in_specs=in_specs,
            out_specs=out_specs,
        ),
        compiler_params=pltpu.CompilerParams(
            dimension_semantics=dims,
            vmem_limit_bytes=vmem_limit,
        ),
        cost_estimate=cost,
    )
    return call(*args)


def _reference(x):
    """Pure-JAX reference reproducing the PyTorch forward."""
    x3 = x[:, :3].astype(jnp.float32)
    xp = jnp.pad(x3, ((0, 0), (0, 0), (1, 1), (1, 1)))
    v = xp[:, :, 2:, 1:-1] - xp[:, :, :-2, 1:-1]
    h = xp[:, :, 1:-1, 2:] - xp[:, :, 1:-1, :-2]
    return jnp.sqrt(v * v + h * h + 1e-6)


if __name__ == "__main__":
    key = jax.random.PRNGKey(0)
    k0, k1 = jax.random.split(key)

    # Default path: whole planes, batch-folded blocks, unaligned W -> concat shifts.
    x = jax.random.normal(k0, (2, 4, 16, 16), dtype=jnp.float32)
    ref = _reference(x)
    out = jax.block_until_ready(get_gradient_nopadding(x))
    assert out.shape == (2, 3, 16, 16)
    assert jnp.allclose(out, ref, atol=1e-5, rtol=1e-5)

    # H-strip halo path (used when a whole plane does not fit the VMEM budget).
    out_s = jax.block_until_ready(get_gradient_nopadding(x, _force_path="strip"))
    assert jnp.allclose(out_s, ref, atol=1e-5, rtol=1e-5)

    # Lane/sublane-aligned shape exercises the pltpu.roll path.
    x2 = jax.random.normal(k1, (2, 4, 16, 128), dtype=jnp.float32)
    out2 = jax.block_until_ready(get_gradient_nopadding(x2))
    assert out2.shape == (2, 3, 16, 128)
    assert jnp.allclose(out2, _reference(x2), atol=1e-5, rtol=1e-5)

    print("KERNEL_OK")
</pallas_src>

<mosaic_0001>
module attributes {stable_mosaic.version = 11 : i64} {
  func.func @_grad_block_kernel(%arg0: i32, %arg1: i32, %arg2: memref<2x1x16x16xf32, #tpu.memory_space<vmem>>, %arg3: memref<2x1x16x16xf32, #tpu.memory_space<vmem>>) attributes {dimension_semantics = [#tpu.dimension_semantics<parallel>, #tpu.dimension_semantics<parallel>], iteration_bounds = array<i64: 1, 3>, scalar_prefetch = 0 : i64, scratch_operands = 0 : i64, tpu.core_type = #tpu.core_type<tc>, window_params = [{transform_indices = @transform_0, window_bounds = array<i64: 2, 1, 16, 16>}, {transform_indices = @transform_1, window_bounds = array<i64: 2, 1, 16, 16>}]} {
    %c0 = arith.constant 0 : index
    %c0_0 = arith.constant 0 : index
    %c0_1 = arith.constant 0 : index
    %c0_2 = arith.constant 0 : index
    %0 = vector.load %arg2[%c0, %c0_0, %c0_1, %c0_2] : memref<2x1x16x16xf32, #tpu.memory_space<vmem>>, vector<1x1x16x16xf32>
    %1 = vector.shape_cast %0 : vector<1x1x16x16xf32> to vector<16x16xf32>
    %cst = arith.constant 0.000000e+00 : f32
    %2 = vector.broadcast %cst : f32 to vector<1x16xf32>
    %3 = vector.extract_strided_slice %1 {offsets = [0, 0], sizes = [15, 16], strides = [1, 1]} : vector<16x16xf32> to vector<15x16xf32>
    %4 = tpu.concatenate %2, %3 in 0 : vector<1x16xf32>, vector<15x16xf32> -> vector<16x16xf32>
    %5 = vector.extract_strided_slice %1 {offsets = [1, 0], sizes = [15, 16], strides = [1, 1]} : vector<16x16xf32> to vector<15x16xf32>
    %6 = tpu.concatenate %5, %2 in 0 : vector<15x16xf32>, vector<1x16xf32> -> vector<16x16xf32>
    %7 = arith.subf %6, %4 : vector<16x16xf32>
    %cst_3 = arith.constant 0.000000e+00 : f32
    %8 = vector.broadcast %cst_3 : f32 to vector<16x1xf32>
    %9 = vector.extract_strided_slice %1 {offsets = [0, 0], sizes = [16, 15], strides = [1, 1]} : vector<16x16xf32> to vector<16x15xf32>
    %10 = tpu.concatenate %8, %9 in 1 : vector<16x1xf32>, vector<16x15xf32> -> vector<16x16xf32>
    %11 = vector.extract_strided_slice %1 {offsets = [0, 1], sizes = [16, 15], strides = [1, 1]} : vector<16x16xf32> to vector<16x15xf32>
    %12 = tpu.concatenate %11, %8 in 1 : vector<16x15xf32>, vector<16x1xf32> -> vector<16x16xf32>
    %13 = arith.subf %12, %10 : vector<16x16xf32>
    %14 = arith.mulf %7, %7 : vector<16x16xf32>
    %15 = arith.mulf %13, %13 : vector<16x16xf32>
    %16 = arith.addf %14, %15 : vector<16x16xf32>
    %cst_4 = arith.constant 9.99999997E-7 : f32
    %17 = vector.broadcast %cst_4 : f32 to vector<16x16xf32>
    %18 = arith.addf %16, %17 : vector<16x16xf32>
    %19 = math.sqrt %18 : vector<16x16xf32>
    %c0_5 = arith.constant 0 : index
    %c0_6 = arith.constant 0 : index
    %c0_7 = arith.constant 0 : index
    %c0_8 = arith.constant 0 : index
    %20 = vector.load %arg3[%c0_5, %c0_6, %c0_7, %c0_8] : memref<2x1x16x16xf32, #tpu.memory_space<vmem>>, vector<1x1x16x16xf32>
    %21 = vector.shape_cast %20 : vector<1x1x16x16xf32> to vector<16x16xf32>
    %22 = vector.shape_cast %19 : vector<16x16xf32> to vector<1x1x16x16xf32>
    tpu.vector_store %arg3[%c0_5, %c0_6, %c0_7, %c0_8], %22 {strides = array<i32>} : memref<2x1x16x16xf32, #tpu.memory_space<vmem>>, vector<1x1x16x16xf32>,
    %c1 = arith.constant 1 : index
    %c0_9 = arith.constant 0 : index
    %c0_10 = arith.constant 0 : index
    %c0_11 = arith.constant 0 : index
    %23 = vector.load %arg2[%c1, %c0_9, %c0_10, %c0_11] : memref<2x1x16x16xf32, #tpu.memory_space<vmem>>, vector<1x1x16x16xf32>
    %24 = vector.shape_cast %23 : vector<1x1x16x16xf32> to vector<16x16xf32>
    %cst_12 = arith.constant 0.000000e+00 : f32
    %25 = vector.broadcast %cst_12 : f32 to vector<1x16xf32>
    %26 = vector.extract_strided_slice %24 {offsets = [0, 0], sizes = [15, 16], strides = [1, 1]} : vector<16x16xf32> to vector<15x16xf32>
    %27 = tpu.concatenate %25, %26 in 0 : vector<1x16xf32>, vector<15x16xf32> -> vector<16x16xf32>
    %28 = vector.extract_strided_slice %24 {offsets = [1, 0], sizes = [15, 16], strides = [1, 1]} : vector<16x16xf32> to vector<15x16xf32>
    %29 = tpu.concatenate %28, %25 in 0 : vector<15x16xf32>, vector<1x16xf32> -> vector<16x16xf32>
    %30 = arith.subf %29, %27 : vector<16x16xf32>
    %cst_13 = arith.constant 0.000000e+00 : f32
    %31 = vector.broadcast %cst_13 : f32 to vector<16x1xf32>
    %32 = vector.extract_strided_slice %24 {offsets = [0, 0], sizes = [16, 15], strides = [1, 1]} : vector<16x16xf32> to vector<16x15xf32>
    %33 = tpu.concatenate %31, %32 in 1 : vector<16x1xf32>, vector<16x15xf32> -> vector<16x16xf32>
    %34 = vector.extract_strided_slice %24 {offsets = [0, 1], sizes = [16, 15], strides = [1, 1]} : vector<16x16xf32> to vector<16x15xf32>
    %35 = tpu.concatenate %34, %31 in 1 : vector<16x15xf32>, vector<16x1xf32> -> vector<16x16xf32>
    %36 = arith.subf %35, %33 : vector<16x16xf32>
    %37 = arith.mulf %30, %30 : vector<16x16xf32>
    %38 = arith.mulf %36, %36 : vector<16x16xf32>
    %39 = arith.addf %37, %38 : vector<16x16xf32>
    %cst_14 = arith.constant 9.99999997E-7 : f32
    %40 = vector.broadcast %cst_14 : f32 to vector<16x16xf32>
    %41 = arith.addf %39, %40 : vector<16x16xf32>
    %42 = math.sqrt %41 : vector<16x16xf32>
    %c1_15 = arith.constant 1 : index
    %c0_16 = arith.constant 0 : index
    %c0_17 = arith.constant 0 : index
    %c0_18 = arith.constant 0 : index
    %43 = vector.load %arg3[%c1_15, %c0_16, %c0_17, %c0_18] : memref<2x1x16x16xf32, #tpu.memory_space<vmem>>, vector<1x1x16x16xf32>
    %44 = vector.shape_cast %43 : vector<1x1x16x16xf32> to vector<16x16xf32>
    %45 = vector.shape_cast %42 : vector<16x16xf32> to vector<1x1x16x16xf32>
    tpu.vector_store %arg3[%c1_15, %c0_16, %c0_17, %c0_18], %45 {strides = array<i32>} : memref<2x1x16x16xf32, #tpu.memory_space<vmem>>, vector<1x1x16x16xf32>,
    return
  }
  func.func @transform_0(%arg0: i32, %arg1: i32) -> (i32, i32, i32, i32) {
    %c0_i32 = arith.constant 0 : i32
    %c0_i32_0 = arith.constant 0 : i32
    %c0_i32_1 = arith.constant 0 : i32
    return %arg0, %arg1, %c0_i32, %c0_i32_0 : i32, i32, i32, i32
  }
  func.func @transform_1(%arg0: i32, %arg1: i32) -> (i32, i32, i32, i32) {
    %c0_i32 = arith.constant 0 : i32
    %c0_i32_0 = arith.constant 0 : i32
    %c0_i32_1 = arith.constant 0 : i32
    return %arg0, %arg1, %c0_i32, %c0_i32_0 : i32, i32, i32, i32
  }
}

</mosaic_0001>

<llo_original>
// kernel: tpu_custom_call.1
$region0: #{tpu_custom_call.1}
  #allocation0 [shape = 'u32[]', space=smem, size = 0x4, offset = 0x4, fixed_abs, tag = 'smem constant byte address 0x4 - core index']
  #allocation1 [shape = 'u32[144,128]{1,0:T(1,128)}', space=vmem, size = 0x12000, scoped, tag = 'internal scratch']
  #allocation6 [shape = 's32[]', space=sflag, size = 0x4, offset = 0, fixed_abs, tag = 'sflag constant byte address 0x0 - dummy sync flag']
  #allocation8 [shape = 's32[]', space=sflag, size = 0x4, offset = 0, fixed_abs, tag = 'sflag constant byte address 0x0 - dummy sync flag']
  %s0 = inlined_call_operand.hbm [shape: f32[2,4,16,16], index: 0, kind: input, shape index: {}]
  %s1 = inlined_call_operand.hbm [shape: f32[2,3,16,16], index: 1, kind: output, shape index: {}]
  %s2 = sld [smem:[#allocation0]]
  $region41: #{tpu_custom_call.1} parent=0
    _
  %s4 = ssub.s32 1, %s2
  %s5 = scalar_select 0, %s4, %s2
  $region1: #{tpu_custom_call.1} parent=0
    #allocation2 [shape = 'u8[32768]{0}', space=vmem, size = 0x8000, scoped, tag = 'input window, operand 0']
    #allocation3 [shape = 's32[2]{0}', space=sflag, size = 0x8, scoped, tag = 'scoped memory for tpu_custom_call.1']
    #allocation4 [shape = 's32[2]{0}', space=sflag, size = 0x8, scoped, tag = 'scoped memory for tpu_custom_call.1']
    #allocation5 [shape = 'u8[32768]{0}', space=vmem, size = 0x8000, scoped, tag = 'output window, operand 0']
    %6 = vsyncpa [#allocation3], 0
    %s7 = scalar_lea.sflag [#allocation3], 1
    %8 = vsyncpa %s7, 0
    %9 = vsyncpa [#allocation4], 0
    %s10 = scalar_lea.sflag [#allocation4], 1
    %11 = vsyncpa %s10, 0
    loop: start=0, step=1, limit=5
    $region2: #{tpu_custom_call.1} parent=1 // loop_pre_header
      _
    $region3: #{tpu_custom_call.1} parent=1 // loop_header
      %s13 = sphi 0, %s17
      %p14 = scmp.ge.s32.totalorder %s13, 5
      %s20 = sphi 0, %s32
      %s21 = sphi 0, %s28
      %s22 = sphi 0, %s20
      %s23 = sphi 0, %s21
      %s24 = sphi 0, %s22
      %s25 = sphi 0, %s23
      %s37 = sphi 0, %s39
      %s40 = sphi 0, %s37
      %s41 = sphi 0, %s40
      %s57 = sphi 0, %s41
      %s65 = sphi 0, %s67
      %s68 = sphi 0, %s65
      %s69 = sphi 0, %s68
      %s85 = sphi 0, %s69
    $region4: #{tpu_custom_call.1} parent=1 // loop_header_branch
      %16 = sbr.rel (%p14) target = $region8
    $region5: #{tpu_custom_call.1} parent=1 // loop_body
      %s18 = ssub.s32 %s13, 1
      %s19 = ssub.s32 %s13, 2
      %s26 = sadd.s32 1, %s21
      %p27 = scmp.ge.s32.totalorder %s26, 3
      %s28 = scalar_select %p27, 0, %s26
      %s29 = sadd.s32 1, %s20
      %s30 = scalar_select %p27, %s29, %s20
      %p31 = scmp.ge.s32.totalorder %s30, 1
      %s32 = scalar_select %p31, 0, %s30
      %s33 = ssub.s32 %s20, %s32
      %s34 = ssub.s32 %s21, %s28
      %s35 = sor.u32 %s33, %s34
      %p36 = scmp.eq.s32.totalorder %s35, 0
      %s38 = sadd.s32 %s37, 1
      %s39 = scalar_select %p36, %s37, %s38
      %p42 = pneg %p36
      %p43 = scmp.eq.s32.totalorder %s13, 2
      %p44 = por %p42, %p43
      %p45 = scmp.ne.s32.totalorder %s37, %s40
      %p46 = scmp.eq.s32.totalorder %s13, 0
      %p47 = por %p45, %p46
      %p48 = scmp.ne.s32.totalorder %s37, %s40
      %p49 = scmp.eq.s32.totalorder %s18, 2
      %p50 = por %p48, %p49
      %p51 = scmp.ne.s32.totalorder %s40, %s41
      %p52 = scmp.eq.s32.totalorder %s18, 0
      %p53 = por %p51, %p52
      %p54 = scmp.ne.s32.totalorder %s40, %s41
      %p55 = scmp.eq.s32.totalorder %s19, 2
      %p56 = por %p54, %p55
      %p58 = scmp.ne.s32.totalorder %s41, %s57
      %p59 = scmp.eq.s32.totalorder %s19, 0
      %p60 = por %p58, %p59
      %s61 = ssub.s32 %s20, %s32
      %s62 = ssub.s32 %s21, %s28
      %s63 = sor.u32 %s61, %s62
      %p64 = scmp.eq.s32.totalorder %s63, 0
      %s66 = sadd.s32 %s65, 1
      %s67 = scalar_select %p64, %s65, %s66
      %p70 = pneg %p64
      %p71 = scmp.eq.s32.totalorder %s13, 2
      %p72 = por %p70, %p71
      %p73 = scmp.ne.s32.totalorder %s65, %s68
      %p74 = scmp.eq.s32.totalorder %s13, 0
      %p75 = por %p73, %p74
      %p76 = scmp.ne.s32.totalorder %s65, %s68
      %p77 = scmp.eq.s32.totalorder %s18, 2
      %p78 = por %p76, %p77
      %p79 = scmp.ne.s32.totalorder %s68, %s69
      %p80 = scmp.eq.s32.totalorder %s18, 0
      %p81 = por %p79, %p80
      %p82 = scmp.ne.s32.totalorder %s68, %s69
      %p83 = scmp.eq.s32.totalorder %s19, 2
      %p84 = por %p82, %p83
      %p86 = scmp.ne.s32.totalorder %s69, %s85
      %p87 = scmp.eq.s32.totalorder %s19, 0
      %p88 = por %p86, %p87
      %p89 = scmp.le.s32.totalorder 1, %s13
      %p90 = scmp.lt.s32.totalorder %s13, 4
      %p91 = pnand %p89, %p90
      %p92 = pneg %p91
      // Predicated region
      $region9: #{tpu_custom_call.1} parent=5 // pred_check
        _
      $region10: #{tpu_custom_call.1} parent=5 // pred_check_branch
        %94 = sbr.rel (%p91) target = $region12
      $region11: #{tpu_custom_call.1} parent=5 // pred_region
        %s95 = ssub.s32 %s13, 1
      $region12: #{tpu_custom_call.1} parent=5 // pred_fallthru
        _
      %p96 = scmp.lt.s32.totalorder %s13, 3
      // Predicated region
      $region13: #{tpu_custom_call.1} parent=5 // pred_check
        %p97 = pneg %p96
      $region14: #{tpu_custom_call.1} parent=5 // pred_check_branch
        %99 = sbr.rel (%p97) target = $region16
      $region15: #{tpu_custom_call.1} parent=5 // pred_region
        // Predicated region
        $region17: #{tpu_custom_call.1} parent=15 // pred_check
          %p100 = pneg %p47
        $region18: #{tpu_custom_call.1} parent=15 // pred_check_branch
          %102 = sbr.rel (%p100) target = $region20
        $region19: #{tpu_custom_call.1} parent=15 // pred_region
          #allocation7 [shape = 'u32[6]{0}', space=smem, size = 0x18, scoped, tag = 'DMA stride descriptor']
          %s103 = sand.u32 %s37, 1
          %s104 = scalar_lea.sflag [#allocation3], %s103
          %s105 = sand.u32 %s37, 1
          %s106 = smul.addr %s105, 32
          %s107 = scalar_lea.vmem [#allocation2], %s106
          %s108 = smul.u32 2, %s20
          %s110 = ssub.s32 512, 512
          %111 = vsyncadd %s104, %s110
          %s112 = smul.addr %s21, 2
          %s113 = smul.addr %s108, 8
          %s114 = sadd.s32 %s112, %s113
          %s115 = smul.addr %s114, 128
          %s116 = scalar_lea.hbm %s0, %s115
          %s118 = sshll.u32 1, 14
          %s119 = sxor.u32 4294967295, %s118
          %s121 = sld [smem:[#allocation0]]
          %s122 = sadd.s32 2, %s121
          %s124 = sshll.u32 7, 26
          %s125 = sxor.u32 4294967295, %s124
          %s126 = sand.u32 0, %s125
          %s127 = sshll.u32 %s122, 26
          %s128 = sor.u32 %s126, %s127
          %s129 = sshll.u32 %s107, 4
          %s130 = int_to_ptr.vmem [resolvable:$true] %s129
          %136 = sst [smem:[#allocation7]] 1024
          %s137 = scalar_lea.smem [#allocation7], 1
          %138 = sst [smem:[%s137]] 256
          %s139 = scalar_lea.smem [#allocation7], 2
          %140 = sst [smem:[%s139]] 2
          %s141 = scalar_lea.smem [#allocation7], 3
          %142 = sst [smem:[%s141]] 128
          %s143 = scalar_lea.smem [#allocation7], 4
          %144 = sst [smem:[%s143]] 128
          %s145 = scalar_lea.smem [#allocation7], 5
          %146 = sst [smem:[%s145]] 8
          %148 = dma.general %s116, 512, %s130, %s104, [#allocation6], [#allocation7], %s128, 0
        $region20: #{tpu_custom_call.1} parent=15 // pred_fallthru
          _
      $region16: #{tpu_custom_call.1} parent=5 // pred_fallthru
        _
      %p149 = scmp.le.s32.totalorder 1, %s13
      %p150 = scmp.lt.s32.totalorder %s13, 4
      %p151 = pnand %p149, %p150
      %p152 = pneg %p151
      // Predicated region
      $region21: #{tpu_custom_call.1} parent=5 // pred_check
        _
      $region22: #{tpu_custom_call.1} parent=5 // pred_check_branch
        %154 = sbr.rel (%p151) target = $region24
      $region23: #{tpu_custom_call.1} parent=5 // pred_region
        %s155 = ssub.s32 %s13, 1
        %s156 = sand.u32 %s40, 1
        %s157 = scalar_lea.sflag [#allocation3], %s156
        %s158 = sand.u32 %s40, 1
        %s159 = smul.addr %s158, 32
        %s160 = scalar_lea.vmem [#allocation2], %s159
        // Predicated region
        $region25: #{tpu_custom_call.1} parent=23 // pred_check
          %p161 = pneg %p53
        $region26: #{tpu_custom_call.1} parent=23 // pred_check_branch
          %163 = sbr.rel (%p161) target = $region28
        $region27: #{tpu_custom_call.1} parent=23 // pred_region
          %164 = dma.done %s157, 512
        $region28: #{tpu_custom_call.1} parent=23 // pred_fallthru
          _
        %s165 = sand.u32 %s40, 1
        %s166 = scalar_lea.sflag [#allocation3], %s165
        %s167 = sand.u32 %s40, 1
        %s168 = smul.addr %s167, 32
        %s169 = scalar_lea.vmem [#allocation2], %s168
        %p170 = pneg %p53
        %p171 = pneg %p50
        %p172 = pneg %p81
        %p173 = pneg %p78
        %s174 = sand.u32 %s68, 1
        %s175 = scalar_lea.sflag [#allocation4], %s174
        %s176 = sand.u32 %s68, 1
        %s177 = smul.addr %s176, 32
        %s178 = scalar_lea.vmem [#allocation5], %s177
        %s179 = smul.u32 2, %s22
        %s180 = smul.u32 2, %s22
        %v181 = vld [vmem:[%s160] sm:$0xff]
        %v182 = vld [vmem:[%s160 + $0x8] sm:$0xff]
        %vm185 = vcmask 1040384
        %v186 = vrot.slane %v181, 7
        %v187 = vrot.slane %v182, 7
        %v188 = vsel %vm185, %v186, %v187
        %v191 = vsel %vm185, 0.0, %v186
        %vm192 = vcmask 1046528
        %v193 = vrot.slane %v181, 1
        %v194 = vrot.slane %v182, 1
        %v195 = vsel %vm192, %v193, %v194
        %v198 = vsel %vm192, %v194, 0.0
        %v199 = vsub.f32 %v195, %v191
        %v200 = vsub.f32 %v198, %v188
        %201 = vrot.lane.b32.xlu0 %v181, 1
        %v202 = vpop.permute.xlu0 %201
        %203 = vrot.lane.b32.xlu0 %v182, 1
        %v204 = vpop.permute.xlu0 %203
        %vm207 = vcmask 7168
        %v208 = vsel %vm207, 0.0, %v202
        %v209 = vsel %vm207, 0.0, %v204
        %210 = vrot.lane.b32.xlu0 %v181, 127
        %v211 = vpop.permute.xlu0 %210
        %212 = vrot.lane.b32.xlu0 %v182, 127
        %v213 = vpop.permute.xlu0 %212
        %vm216 = vcmask 121856
        %v217 = vsel %vm216, %v211, 0.0
        %v218 = vsel %vm216, %v213, 0.0
        %v219 = vsub.f32 %v217, %v208
        %v220 = vsub.f32 %v218, %v209
        %v221 = vmul.f32 %v199, %v199
        %v222 = vmul.f32 %v200, %v200
        %v223 = vmul.f32 %v219, %v219
        %v224 = vmul.f32 %v220, %v220
        %v225 = vadd.f32 %v221, %v223
        %v226 = vadd.f32 %v222, %v224
        %v227 = vadd.f32 %v225, 1e-06
        %v228 = vadd.f32 %v226, 1e-06
        %v229 = vrsqrt.pop %v227
        %v230 = vmul.f32 %v227, %v229
        %vm231 = vcmp.eq.f32.partialorder %v227, inf
        %v232 = vsel %vm231, %v227, %v230
        %vm233 = vcmp.eq.f32.partialorder %v227, 0.0
        %v234 = vand.u32 %v227, 2147483648
        %v235 = vsel %vm233, %v234, %v232
        %v236 = vrsqrt.pop %v228
        %v237 = vmul.f32 %v228, %v236
        %vm238 = vcmp.eq.f32.partialorder %v228, inf
        %v239 = vsel %vm238, %v228, %v237
        %vm240 = vcmp.eq.f32.partialorder %v228, 0.0
        %v241 = vand.u32 %v228, 2147483648
        %v242 = vsel %vm240, %v241, %v239
        %vm243 = vcmask 130048
        %244 = vst.msk [vmem:[%s178] sm:$0xff] %vm243, %v235
        %245 = vst.msk [vmem:[%s178 + $0x8] sm:$0xff] %vm243, %v242
        %s246 = scalar_lea.vmem %s160, 16 [#allocation2]
        %v247 = vld [vmem:[%s246] sm:$0xff]
        %v248 = vld [vmem:[%s246 + $0x8] sm:$0xff]
        %v251 = vrot.slane %v247, 7
        %v252 = vrot.slane %v248, 7
        %v253 = vsel %vm185, %v251, %v252
        %v256 = vsel %vm185, 0.0, %v251
        %v257 = vrot.slane %v247, 1
        %v258 = vrot.slane %v248, 1
        %v259 = vsel %vm192, %v257, %v258
        %v262 = vsel %vm192, %v258, 0.0
        %v263 = vsub.f32 %v259, %v256
        %v264 = vsub.f32 %v262, %v253
        %265 = vrot.lane.b32.xlu0 %v247, 1
        %v266 = vpop.permute.xlu0 %265
        %267 = vrot.lane.b32.xlu0 %v248, 1
        %v268 = vpop.permute.xlu0 %267
        %v271 = vsel %vm207, 0.0, %v266
        %v272 = vsel %vm207, 0.0, %v268
        %273 = vrot.lane.b32.xlu0 %v247, 127
        %v274 = vpop.permute.xlu0 %273
        %275 = vrot.lane.b32.xlu0 %v248, 127
        %v276 = vpop.permute.xlu0 %275
        %v279 = vsel %vm216, %v274, 0.0
        %v280 = vsel %vm216, %v276, 0.0
        %v281 = vsub.f32 %v279, %v271
        %v282 = vsub.f32 %v280, %v272
        %v283 = vmul.f32 %v263, %v263
        %v284 = vmul.f32 %v264, %v264
        %v285 = vmul.f32 %v281, %v281
        %v286 = vmul.f32 %v282, %v282
        %v287 = vadd.f32 %v283, %v285
        %v288 = vadd.f32 %v284, %v286
        %v289 = vadd.f32 %v287, 1e-06
        %v290 = vadd.f32 %v288, 1e-06
        %v291 = vrsqrt.pop %v289
        %v292 = vmul.f32 %v289, %v291
        %vm293 = vcmp.eq.f32.partialorder %v289, inf
        %v294 = vsel %vm293, %v289, %v292
        %vm295 = vcmp.eq.f32.partialorder %v289, 0.0
        %v296 = vand.u32 %v289, 2147483648
        %v297 = vsel %vm295, %v296, %v294
        %v298 = vrsqrt.pop %v290
        %v299 = vmul.f32 %v290, %v298
        %vm300 = vcmp.eq.f32.partialorder %v290, inf
        %v301 = vsel %vm300, %v290, %v299
        %vm302 = vcmp.eq.f32.partialorder %v290, 0.0
        %v303 = vand.u32 %v290, 2147483648
        %v304 = vsel %vm302, %v303, %v301
        %s305 = scalar_lea.vmem %s178, 16 [#allocation5]
        %306 = vst.msk [vmem:[%s305] sm:$0xff] %vm243, %v297
        %307 = vst.msk [vmem:[%s305 + $0x8] sm:$0xff] %vm243, %v304
        %s308 = sand.u32 %s68, 1
        %s309 = scalar_lea.sflag [#allocation4], %s308
        %s310 = sand.u32 %s68, 1
        %s311 = smul.addr %s310, 32
        %s312 = scalar_lea.vmem [#allocation5], %s311
        // Predicated region
        $region29: #{tpu_custom_call.1} parent=23 // pred_check
          %p313 = pneg %p78
        $region30: #{tpu_custom_call.1} parent=23 // pred_check_branch
          %315 = sbr.rel (%p313) target = $region32
        $region31: #{tpu_custom_call.1} parent=23 // pred_region
          #allocation9 [shape = 'u32[6]{0}', space=smem, size = 0x18, scoped, tag = 'DMA stride descriptor']
          %s316 = smul.u32 2, %s22
          %s318 = ssub.s32 512, 512
          %319 = vsyncadd %s309, %s318
          %s320 = smul.addr %s23, 2
          %s321 = smul.addr %s316, 6
          %s322 = sadd.s32 %s320, %s321
          %s323 = smul.addr %s322, 128
          %s324 = scalar_lea.hbm %s1, %s323
          %s326 = sshll.u32 1, 14
          %s327 = sxor.u32 4294967295, %s326
          %s330 = sshll.u32 7, 18
          %s331 = sxor.u32 4294967295, %s330
          %s332 = sand.u32 0, %s331
          %s334 = sor.u32 %s332, 0
          %s336 = sshll.u32 3, 24
          %s337 = sxor.u32 4294967295, %s336
          %s338 = sand.u32 %s334, %s337
          %s340 = sor.u32 %s338, 0
          %s341 = sshll.u32 %s312, 4
          %s342 = int_to_ptr.vmem [resolvable:$true] %s341
          %348 = sst [smem:[#allocation9]] 256
          %s349 = scalar_lea.smem [#allocation9], 1
          %350 = sst [smem:[%s349]] 768
          %s351 = scalar_lea.smem [#allocation9], 2
          %352 = sst [smem:[%s351]] 2
          %s353 = scalar_lea.smem [#allocation9], 3
          %354 = sst [smem:[%s353]] 128
          %s355 = scalar_lea.smem [#allocation9], 4
          %356 = sst [smem:[%s355]] 128
          %s357 = scalar_lea.smem [#allocation9], 5
          %358 = sst [smem:[%s357]] 8
          %360 = dma.general %s342, 512, %s324, %s309, [#allocation8], [#allocation9], %s340, 0
        $region32: #{tpu_custom_call.1} parent=23 // pred_fallthru
          _
      $region24: #{tpu_custom_call.1} parent=5 // pred_fallthru
        _
      %p361 = scmp.le.s32.totalorder 2, %s13
      // Predicated region
      $region33: #{tpu_custom_call.1} parent=5 // pred_check
        %p362 = pneg %p361
      $region34: #{tpu_custom_call.1} parent=5 // pred_check_branch
        %364 = sbr.rel (%p362) target = $region36
      $region35: #{tpu_custom_call.1} parent=5 // pred_region
        %s365 = ssub.s32 %s13, 2
        // Predicated region
        $region37: #{tpu_custom_call.1} parent=35 // pred_check
          %p366 = pneg %p84
        $region38: #{tpu_custom_call.1} parent=35 // pred_check_branch
          %368 = sbr.rel (%p366) target = $region40
        $region39: #{tpu_custom_call.1} parent=35 // pred_region
          %s369 = sand.u32 %s69, 1
          %s370 = scalar_lea.sflag [#allocation4], %s369
          %s371 = sand.u32 %s69, 1
          %s372 = smul.addr %s371, 32
          %s373 = scalar_lea.vmem [#allocation5], %s372
          %374 = dma.done %s370, 512
        $region40: #{tpu_custom_call.1} parent=35 // pred_fallthru
          _
      $region36: #{tpu_custom_call.1} parent=5 // pred_fallthru
        _
    $region6: #{tpu_custom_call.1} parent=1 // loop_footer
      %s17 = sadd.s32 1, %s13
    $region7: #{tpu_custom_call.1} parent=1 // loop_footer_branch
      %12 = sbr.rel target = $region3
    $region8: #{tpu_custom_call.1} parent=1 // loop_exit
      _
    %375 = vsyncpa [#allocation3], 1
    %s376 = scalar_lea.sflag [#allocation3], 1
    %377 = vsyncpa %s376, 1
    %378 = vsyncpa [#allocation4], 1
    %s379 = scalar_lea.sflag [#allocation4], 1
    %380 = vsyncpa %s379, 1

</llo_original>
